<compile_context>
chip_gen: v5e
topology: v5e:2x2
jax: 0.10.0
libtpu: 0.0.40
codegen_flags: <defaults>
</compile_context>

<pallas_src>
import math
import functools

import jax
import jax.numpy as jnp
from jax.experimental import pallas as pl
from jax.experimental.pallas import tpu as pltpu

_SQRT3 = math.sqrt(3.0)
LANE = 128      # TPU lane width: output feature dim is padded to this
SUBLANE = 8     # batch tiles are kept a multiple of the sublane count


def _round_up(x, m):
    return ((x + m - 1) // m) * m


# ---------------------------------------------------------------------------
# Pallas kernel: whole MLP hot path (matmuls + SiLU + softplus) in VMEM.
# ---------------------------------------------------------------------------
def _silu(x):
    # logistic rides the EUP slot; the multiply is a single VALU op.
    return x * jax.nn.sigmoid(x)


def _softplus(x):
    # Numerically stable softplus: max(x,0) + log1p(exp(-|x|)).
    # Agrees with both jax.nn.softplus and PyTorch's threshold-20 form.
    return jnp.maximum(x, 0.0) + jnp.log1p(jnp.exp(-jnp.abs(x)))


def _sp_fcnn_kernel(t_ref, w1_ref, b1_ref, wm_ref, bm_ref, wo_ref, bo_ref, o_ref,
                    *, c0, c1, num_mid):
    # Affine time transform folded into one FMA: x = t*c0 + c1
    #   (c0 = 2*sqrt(3)/dt, c1 = -sqrt(3)).
    x = t_ref[...] * c0 + c1                                       # (TB, 1)

    # First layer Linear(1 -> H): a K=1 matmul is a degenerate outer product,
    # so keep it on the VPU as a broadcast multiply-add (no MXU round trip).
    h = _silu(x * w1_ref[...] + b1_ref[...])                       # (TB, H)

    # Hidden layers: Linear(H -> H) + SiLU (static unroll; runs on the MXU).
    # TODO(synk): optionally cast operands to bf16 (keeping f32 accumulation)
    # for a ~2x MXU-rate win at large H if the accuracy budget allows.
    for l in range(num_mid):
        h = _silu(jnp.dot(h, wm_ref[l], preferred_element_type=jnp.float32)
                  + bm_ref[l])

    # Output layer (lane-padded to 128 columns) + Positive (softplus).
    y = jnp.dot(h, wo_ref[...], preferred_element_type=jnp.float32) + bo_ref[...]
    o_ref[...] = _softplus(y).astype(o_ref.dtype)                  # (TB, D_pad)


# ---------------------------------------------------------------------------
# Wrapper
# ---------------------------------------------------------------------------
def strictly_positive_fcnn(t, params, dt, *, block_b=512):
    """t: (B, 1) float32 time stamps. Returns (B, num_outputs), strictly positive.

    block_b: batch tile. Guidance: >=128 fills v5e MXU rows, >=256 for v6e/v7x;
    512 (default) also amortizes per-grid-step overhead. The wrapper pads the
    batch, so B need not be a multiple of the tile.
    """
    w1, b1, wm, bm, wo, bo = params
    B = t.shape[0]
    H = w1.shape[1]
    D = wo.shape[1]
    Lm = wm.shape[0]

    # ---- batch tiling: clamp tile to the (sublane-rounded) batch, pad batch
    # up to a multiple of the tile.  Activations are (block_b, H) f32 so even
    # block_b=1024 is tiny relative to VMEM. ----
    block_b = max(SUBLANE, min(block_b, _round_up(B, SUBLANE)))
    block_b = _round_up(block_b, SUBLANE)
    B_pad = _round_up(B, block_b)
    if B_pad != B:
        t = jnp.pad(t, ((0, B_pad - B), (0, 0)))

    # ---- lane-dense output: pad num_outputs to 128 so the final matmul uses
    # full MXU columns and the output stores are unmasked vst. ----
    D_pad = _round_up(D, LANE)
    if D_pad != D:
        wo = jnp.pad(wo, ((0, 0), (0, D_pad - D)))
        bo = jnp.pad(bo, ((0, 0), (0, D_pad - D)))

    c0 = 2.0 * _SQRT3 / float(dt)
    c1 = -_SQRT3

    kernel = functools.partial(_sp_fcnn_kernel, c0=c0, c1=c1, num_mid=Lm)

    out = pl.pallas_call(
        kernel,
        out_shape=jax.ShapeDtypeStruct((B_pad, D_pad), t.dtype),
        grid_spec=pltpu.PrefetchScalarGridSpec(
            num_scalar_prefetch=0,
            grid=(B_pad // block_b,),
            in_specs=[
                pl.BlockSpec((block_b, 1), lambda i: (i, 0)),      # t tile
                pl.BlockSpec((1, H), lambda i: (0, 0)),            # W1 (1, H)
                pl.BlockSpec((1, H), lambda i: (0, 0)),            # b1
                # NOTE: these weight specs are grid-invariant; for very large H
                # on v7x (64 MiB VMEM) add pipeline_mode=pl.Buffered(1) and set
                # vmem_limit_bytes to avoid doubling weight VMEM. Negligible here.
                pl.BlockSpec((Lm, H, H), lambda i: (0, 0, 0)),     # mid weights
                pl.BlockSpec((Lm, 1, H), lambda i: (0, 0, 0)),     # mid biases
                pl.BlockSpec((H, D_pad), lambda i: (0, 0)),        # W_out (lane padded)
                pl.BlockSpec((1, D_pad), lambda i: (0, 0)),        # b_out (lane padded)
            ],
            out_specs=pl.BlockSpec((block_b, D_pad), lambda i: (i, 0)),
        ),
        compiler_params=pltpu.CompilerParams(
            # independent batch tiles -> megacore sharding across TCs on v7x
            dimension_semantics=("parallel",)),
    )(t, w1, b1, wm, bm, wo, bo)

    return out[:B, :D]


# ---------------------------------------------------------------------------
# Deterministic parameter init (mimics PyTorch nn.Linear default U(-1/sqrt(fan_in), ...))
# ---------------------------------------------------------------------------
def init_params(key, num_outputs, num_hidden, num_layers, dtype=jnp.float32):
    assert num_layers >= 2
    num_mid = num_layers - 1
    keys = jax.random.split(key, 2 * (num_mid + 2))
    ki = iter(keys)

    def lin(kw, kb, fan_in, shape_w, shape_b):
        bound = 1.0 / math.sqrt(fan_in)
        w = jax.random.uniform(kw, shape_w, dtype, -bound, bound)
        b = jax.random.uniform(kb, shape_b, dtype, -bound, bound)
        return w, b

    w1, b1 = lin(next(ki), next(ki), 1, (1, num_hidden), (1, num_hidden))

    wm_list, bm_list = [], []
    for _ in range(num_mid):
        w, b = lin(next(ki), next(ki), num_hidden,
                   (num_hidden, num_hidden), (1, num_hidden))
        wm_list.append(w)
        bm_list.append(b)
    wm = jnp.stack(wm_list, axis=0)                       # (num_mid, H, H)
    bm = jnp.stack(bm_list, axis=0)                       # (num_mid, 1, H)

    wo, _ = lin(next(ki), next(ki), num_hidden,
                (num_hidden, num_outputs), (1, num_outputs))
    bo = jnp.ones((1, num_outputs), dtype)                # .bias.data.fill_(1.0)

    return (w1, b1, wm, bm, wo, bo)


# Pure-JAX reference for correctness check
def _reference(t, params, dt):
    w1, b1, wm, bm, wo, bo = params
    x = (t * (2.0 / dt) - 1.0) * math.sqrt(3.0)
    h = jax.nn.silu(x @ w1 + b1)
    for l in range(wm.shape[0]):
        h = jax.nn.silu(h @ wm[l] + bm[l])
    return jax.nn.softplus(h @ wo + bo)


if __name__ == "__main__":
    # Small shapes consistent with the module: batch of 16 time stamps,
    # num_outputs=4, num_hidden=32, num_layers=2, t_span=(0, 10).
    num_outputs, num_hidden, num_layers = 4, 32, 2
    t_span = (0.0, 10.0)
    dt = t_span[1] - t_span[0]
    B = 16

    key = jax.random.PRNGKey(0)
    kp, kt = jax.random.split(key)
    params = init_params(kp, num_outputs, num_hidden, num_layers)
    t = jax.random.uniform(kt, (B, 1), jnp.float32, t_span[0], t_span[1])

    out = strictly_positive_fcnn(t, params, dt)
    out = jax.block_until_ready(out)

    ref = _reference(t, params, dt)
    assert out.shape == (B, num_outputs)
    assert bool(jnp.all(out > 0.0))
    assert jnp.allclose(out, ref, rtol=1e-5, atol=1e-5), \
        float(jnp.max(jnp.abs(out - ref)))

    print("KERNEL_OK")
</pallas_src>

<mosaic_0001>
module attributes {stable_mosaic.version = 11 : i64} {
  func.func @_sp_fcnn_kernel(%arg0: i32, %arg1: memref<16x1xf32, #tpu.memory_space<vmem>>, %arg2: memref<1x32xf32, #tpu.memory_space<vmem>>, %arg3: memref<1x32xf32, #tpu.memory_space<vmem>>, %arg4: memref<1x32x32xf32, #tpu.memory_space<vmem>>, %arg5: memref<1x1x32xf32, #tpu.memory_space<vmem>>, %arg6: memref<32x128xf32, #tpu.memory_space<vmem>>, %arg7: memref<1x128xf32, #tpu.memory_space<vmem>>, %arg8: memref<16x128xf32, #tpu.memory_space<vmem>>) attributes {dimension_semantics = [#tpu.dimension_semantics<parallel>], iteration_bounds = array<i64: 1>, scalar_prefetch = 0 : i64, scratch_operands = 0 : i64, tpu.core_type = #tpu.core_type<tc>, window_params = [{transform_indices = @transform_0, window_bounds = array<i64: 16, 1>}, {pipeline_mode = #tpu.pipeline_mode<synchronous>, transform_indices = @transform_1, window_bounds = array<i64: 1, 32>}, {pipeline_mode = #tpu.pipeline_mode<synchronous>, transform_indices = @transform_2, window_bounds = array<i64: 1, 32>}, {pipeline_mode = #tpu.pipeline_mode<synchronous>, transform_indices = @transform_3, window_bounds = array<i64: 1, 32, 32>}, {pipeline_mode = #tpu.pipeline_mode<synchronous>, transform_indices = @transform_4, window_bounds = array<i64: 1, 1, 32>}, {pipeline_mode = #tpu.pipeline_mode<synchronous>, transform_indices = @transform_5, window_bounds = array<i64: 32, 128>}, {pipeline_mode = #tpu.pipeline_mode<synchronous>, transform_indices = @transform_6, window_bounds = array<i64: 1, 128>}, {transform_indices = @transform_7, window_bounds = array<i64: 16, 128>}]} {
    %c0 = arith.constant 0 : index
    %c0_0 = arith.constant 0 : index
    %0 = vector.load %arg1[%c0, %c0_0] : memref<16x1xf32, #tpu.memory_space<vmem>>, vector<16x1xf32>
    %cst = arith.constant 0.346410155 : f32
    %1 = vector.broadcast %cst : f32 to vector<16x1xf32>
    %2 = arith.mulf %0, %1 : vector<16x1xf32>
    %cst_1 = arith.constant -1.73205078 : f32
    %3 = vector.broadcast %cst_1 : f32 to vector<16x1xf32>
    %4 = arith.addf %2, %3 : vector<16x1xf32>
    %c0_2 = arith.constant 0 : index
    %c0_3 = arith.constant 0 : index
    %5 = vector.load %arg2[%c0_2, %c0_3] : memref<1x32xf32, #tpu.memory_space<vmem>>, vector<1x32xf32>
    %6 = vector.broadcast %4 : vector<16x1xf32> to vector<16x32xf32>
    %7 = vector.broadcast %5 : vector<1x32xf32> to vector<16x32xf32>
    %8 = arith.mulf %6, %7 : vector<16x32xf32>
    %c0_4 = arith.constant 0 : index
    %c0_5 = arith.constant 0 : index
    %9 = vector.load %arg3[%c0_4, %c0_5] : memref<1x32xf32, #tpu.memory_space<vmem>>, vector<1x32xf32>
    %10 = vector.broadcast %9 : vector<1x32xf32> to vector<16x32xf32>
    %11 = arith.addf %8, %10 : vector<16x32xf32>
    %12 = arith.negf %11 : vector<16x32xf32>
    %13 = math.exp %12 : vector<16x32xf32>
    %cst_6 = arith.constant 1.000000e+00 : f32
    %14 = vector.broadcast %cst_6 : f32 to vector<16x32xf32>
    %15 = arith.addf %14, %13 : vector<16x32xf32>
    %16 = arith.divf %14, %15 : vector<16x32xf32>
    %17 = arith.mulf %11, %16 : vector<16x32xf32>
    %c0_7 = arith.constant 0 : index
    %c0_8 = arith.constant 0 : index
    %c0_9 = arith.constant 0 : index
    %18 = vector.load %arg4[%c0_7, %c0_8, %c0_9] : memref<1x32x32xf32, #tpu.memory_space<vmem>>, vector<1x32x32xf32>
    %19 = vector.shape_cast %18 : vector<1x32x32xf32> to vector<32x32xf32>
    %cst_10 = arith.constant dense<0.000000e+00> : vector<16x32xf32>
    %20 = tpu.matmul %17, %19, %cst_10 {dimension_numbers = #tpu.dot_dimension_numbers<[1], [0], [0], [1], [0, 0, 1, 1], [], []>} : vector<16x32xf32>, vector<32x32xf32>, vector<16x32xf32> -> vector<16x32xf32>
    %c0_11 = arith.constant 0 : index
    %c0_12 = arith.constant 0 : index
    %c0_13 = arith.constant 0 : index
    %21 = vector.load %arg5[%c0_11, %c0_12, %c0_13] : memref<1x1x32xf32, #tpu.memory_space<vmem>>, vector<1x1x32xf32>
    %22 = vector.shape_cast %21 : vector<1x1x32xf32> to vector<1x32xf32>
    %23 = vector.broadcast %22 : vector<1x32xf32> to vector<16x32xf32>
    %24 = arith.addf %20, %23 : vector<16x32xf32>
    %25 = arith.negf %24 : vector<16x32xf32>
    %26 = math.exp %25 : vector<16x32xf32>
    %cst_14 = arith.constant 1.000000e+00 : f32
    %27 = vector.broadcast %cst_14 : f32 to vector<16x32xf32>
    %28 = arith.addf %27, %26 : vector<16x32xf32>
    %29 = arith.divf %27, %28 : vector<16x32xf32>
    %30 = arith.mulf %24, %29 : vector<16x32xf32>
    %c0_15 = arith.constant 0 : index
    %c0_16 = arith.constant 0 : index
    %31 = vector.load %arg6[%c0_15, %c0_16] : memref<32x128xf32, #tpu.memory_space<vmem>>, vector<32x128xf32>
    %cst_17 = arith.constant dense<0.000000e+00> : vector<16x128xf32>
    %32 = tpu.matmul %30, %31, %cst_17 {dimension_numbers = #tpu.dot_dimension_numbers<[1], [0], [0], [1], [0, 0, 1, 1], [], []>} : vector<16x32xf32>, vector<32x128xf32>, vector<16x128xf32> -> vector<16x128xf32>
    %c0_18 = arith.constant 0 : index
    %c0_19 = arith.constant 0 : index
    %33 = vector.load %arg7[%c0_18, %c0_19] : memref<1x128xf32, #tpu.memory_space<vmem>>, vector<1x128xf32>
    %34 = vector.broadcast %33 : vector<1x128xf32> to vector<16x128xf32>
    %35 = arith.addf %32, %34 : vector<16x128xf32>
    %cst_20 = arith.constant 0.000000e+00 : f32
    %36 = vector.broadcast %cst_20 : f32 to vector<16x128xf32>
    %37 = arith.maximumf %35, %36 : vector<16x128xf32>
    %38 = math.absf %35 : vector<16x128xf32>
    %cst_21 = arith.constant 0.000000e+00 : f32
    %39 = vector.broadcast %cst_21 : f32 to vector<16x128xf32>
    %40 = arith.subf %39, %38 : vector<16x128xf32>
    %41 = math.exp %40 : vector<16x128xf32>
    %42 = math.log1p %41 : vector<16x128xf32>
    %43 = arith.addf %37, %42 : vector<16x128xf32>
    %c0_22 = arith.constant 0 : index
    %c0_23 = arith.constant 0 : index
    %44 = vector.load %arg8[%c0_22, %c0_23] : memref<16x128xf32, #tpu.memory_space<vmem>>, vector<16x128xf32>
    tpu.vector_store %arg8[%c0_22, %c0_23], %43 {strides = array<i32>} : memref<16x128xf32, #tpu.memory_space<vmem>>, vector<16x128xf32>,
    return
  }
  func.func @transform_0(%arg0: i32) -> (i32, i32) {
    %c0_i32 = arith.constant 0 : i32
    %c0_i32_0 = arith.constant 0 : i32
    return %arg0, %c0_i32 : i32, i32
  }
  func.func @transform_1(%arg0: i32) -> (i32, i32) {
    %c0_i32 = arith.constant 0 : i32
    %c0_i32_0 = arith.constant 0 : i32
    %c0_i32_1 = arith.constant 0 : i32
    return %c0_i32, %c0_i32_0 : i32, i32
  }
  func.func @transform_2(%arg0: i32) -> (i32, i32) {
    %c0_i32 = arith.constant 0 : i32
    %c0_i32_0 = arith.constant 0 : i32
    %c0_i32_1 = arith.constant 0 : i32
    return %c0_i32, %c0_i32_0 : i32, i32
  }
  func.func @transform_3(%arg0: i32) -> (i32, i32, i32) {
    %c0_i32 = arith.constant 0 : i32
    %c0_i32_0 = arith.constant 0 : i32
    %c0_i32_1 = arith.constant 0 : i32
    %c0_i32_2 = arith.constant 0 : i32
    return %c0_i32, %c0_i32_0, %c0_i32_1 : i32, i32, i32
  }
  func.func @transform_4(%arg0: i32) -> (i32, i32, i32) {
    %c0_i32 = arith.constant 0 : i32
    %c0_i32_0 = arith.constant 0 : i32
    %c0_i32_1 = arith.constant 0 : i32
    %c0_i32_2 = arith.constant 0 : i32
    return %c0_i32, %c0_i32_0, %c0_i32_1 : i32, i32, i32
  }
  func.func @transform_5(%arg0: i32) -> (i32, i32) {
    %c0_i32 = arith.constant 0 : i32
    %c0_i32_0 = arith.constant 0 : i32
    %c0_i32_1 = arith.constant 0 : i32
    return %c0_i32, %c0_i32_0 : i32, i32
  }
  func.func @transform_6(%arg0: i32) -> (i32, i32) {
    %c0_i32 = arith.constant 0 : i32
    %c0_i32_0 = arith.constant 0 : i32
    %c0_i32_1 = arith.constant 0 : i32
    return %c0_i32, %c0_i32_0 : i32, i32
  }
  func.func @transform_7(%arg0: i32) -> (i32, i32) {
    %c0_i32 = arith.constant 0 : i32
    %c0_i32_0 = arith.constant 0 : i32
    return %arg0, %c0_i32 : i32, i32
  }
}

</mosaic_0001>

<llo_original>
// kernel: tpu_custom_call.1
$region0: #{tpu_custom_call.1}
  #allocation0 [shape = 'u32[]', space=smem, size = 0x4, offset = 0x4, fixed_abs, tag = 'smem constant byte address 0x4 - core index']
  #allocation1 [shape = 'u32[72,128]{1,0:T(1,128)}', space=vmem, size = 0x9000, scoped, tag = 'internal scratch']
  %s0 = inlined_call_operand.vmem [shape: f32[16,1], index: 0, kind: input, shape index: {}]
  %s1 = inlined_call_operand.vmem [shape: f32[1,32], index: 1, kind: input, shape index: {}]
  %s2 = inlined_call_operand.vmem [shape: f32[1,32], index: 2, kind: input, shape index: {}]
  %s3 = inlined_call_operand.hbm [shape: f32[1,32,32], index: 3, kind: input, shape index: {}]
  %s4 = inlined_call_operand.vmem [shape: f32[1,1,32], index: 4, kind: input, shape index: {}]
  %s5 = inlined_call_operand.hbm [shape: f32[32,128], index: 5, kind: input, shape index: {}]
  %s6 = inlined_call_operand.vmem [shape: f32[1,128], index: 6, kind: input, shape index: {}]
  %s7 = inlined_call_operand.hbm [shape: f32[16,128], index: 7, kind: output, shape index: {}]
  %s8 = sld [smem:[#allocation0]]
  $region46: #{tpu_custom_call.1} parent=0
    _
  %s10 = ssub.s32 1, %s8
  %s11 = scalar_select 0, %s10, %s8
  $region1: #{tpu_custom_call.1} parent=0
    #allocation2 [shape = 'u8[16384]{0}', space=vmem, size = 0x4000, scoped, tag = 'input window, operand 3, single buffered']
    #allocation3 [shape = 's32[1]{0}', space=sflag, size = 0x4, scoped, tag = 'scoped memory for tpu_custom_call.1']
    #allocation4 [shape = 's32[1]{0}', space=sflag, size = 0x4, scoped, tag = 'scoped memory for tpu_custom_call.1']
    #allocation5 [shape = 'u8[16384]{0}', space=vmem, size = 0x4000, scoped, tag = 'input window, operand 5, single buffered']
    #allocation6 [shape = 's32[1]{0}', space=sflag, size = 0x4, scoped, tag = 'scoped memory for tpu_custom_call.1']
    #allocation7 [shape = 'u8[8192]{0}', space=vmem, size = 0x2000, scoped, tag = 'output window, operand 0, single buffered']
    %12 = vsyncpa [#allocation3], 0
    %13 = vsyncpa [#allocation6], 0
    %14 = vsyncpa [#allocation4], 0
    // Predicated region
    $region2: #{tpu_custom_call.1} parent=1 // pred_check
      _
    $region3: #{tpu_custom_call.1} parent=1 // pred_check_branch
      %16 = sbr.rel (0) target = $region5
    $region4: #{tpu_custom_call.1} parent=1 // pred_region
      _
    $region5: #{tpu_custom_call.1} parent=1 // pred_fallthru
      _
    // Predicated region
    $region6: #{tpu_custom_call.1} parent=1 // pred_check
      _
    $region7: #{tpu_custom_call.1} parent=1 // pred_check_branch
      %18 = sbr.rel (0) target = $region9
    $region8: #{tpu_custom_call.1} parent=1 // pred_region
      _
    $region9: #{tpu_custom_call.1} parent=1 // pred_fallthru
      _
    // Predicated region
    $region10: #{tpu_custom_call.1} parent=1 // pred_check
      _
    $region11: #{tpu_custom_call.1} parent=1 // pred_check_branch
      %20 = sbr.rel (0) target = $region13
    $region12: #{tpu_custom_call.1} parent=1 // pred_region
      _
    $region13: #{tpu_custom_call.1} parent=1 // pred_fallthru
      _
    // Predicated region
    $region14: #{tpu_custom_call.1} parent=1 // pred_check
      _
    $region15: #{tpu_custom_call.1} parent=1 // pred_check_branch
      %22 = sbr.rel (0) target = $region17
    $region16: #{tpu_custom_call.1} parent=1 // pred_region
      %24 = vsyncadd [#allocation3], 0
      %s25 = sshll.u32 %s3, 4
      %s26 = int_to_ptr.hbm [resolvable:$true] %s25
      %s27 = sshll.u32 [#allocation2], 4
      %s28 = int_to_ptr.vmem [resolvable:$true] %s27
      %33 = dma.hbm_to_vmem [thread:$0]  %s26, 512, %s28, [#allocation3], 128, 128, 8
    $region17: #{tpu_custom_call.1} parent=1 // pred_fallthru
      _
    // Predicated region
    $region18: #{tpu_custom_call.1} parent=1 // pred_check
      _
    $region19: #{tpu_custom_call.1} parent=1 // pred_check_branch
      %35 = sbr.rel (0) target = $region21
    $region20: #{tpu_custom_call.1} parent=1 // pred_region
      _
    $region21: #{tpu_custom_call.1} parent=1 // pred_fallthru
      _
    // Predicated region
    $region22: #{tpu_custom_call.1} parent=1 // pred_check
      _
    $region23: #{tpu_custom_call.1} parent=1 // pred_check_branch
      %37 = sbr.rel (0) target = $region25
    $region24: #{tpu_custom_call.1} parent=1 // pred_region
      %39 = vsyncadd [#allocation6], 0
      %s40 = sshll.u32 %s5, 4
      %s41 = int_to_ptr.hbm [resolvable:$true] %s40
      %s42 = sshll.u32 [#allocation5], 4
      %s43 = int_to_ptr.vmem [resolvable:$true] %s42
      %48 = dma.hbm_to_vmem [thread:$0]  %s41, 512, %s43, [#allocation6], 128, 128, 8
    $region25: #{tpu_custom_call.1} parent=1 // pred_fallthru
      _
    // Predicated region
    $region26: #{tpu_custom_call.1} parent=1 // pred_check
      _
    $region27: #{tpu_custom_call.1} parent=1 // pred_check_branch
      %50 = sbr.rel (0) target = $region29
    $region28: #{tpu_custom_call.1} parent=1 // pred_region
      _
    $region29: #{tpu_custom_call.1} parent=1 // pred_fallthru
      _
    // Predicated region
    $region30: #{tpu_custom_call.1} parent=1 // pred_check
      _
    $region31: #{tpu_custom_call.1} parent=1 // pred_check_branch
      %52 = sbr.rel (0) target = $region33
    $region32: #{tpu_custom_call.1} parent=1 // pred_region
      %54 = dma.done [#allocation3], 512
    $region33: #{tpu_custom_call.1} parent=1 // pred_fallthru
      _
    // Predicated region
    $region34: #{tpu_custom_call.1} parent=1 // pred_check
      _
    $region35: #{tpu_custom_call.1} parent=1 // pred_check_branch
      %56 = sbr.rel (0) target = $region37
    $region36: #{tpu_custom_call.1} parent=1 // pred_region
      %58 = dma.done [#allocation6], 512
    $region37: #{tpu_custom_call.1} parent=1 // pred_fallthru
      _
    %v59 = vld [vmem:[%s0] sm:$0xff]
    %v60 = vld [vmem:[%s0 + $0x8] sm:$0xff]
    %v61 = vmul.f32 %v59, 0.34641016
    %v62 = vmul.f32 %v60, 0.34641016
    %v63 = vadd.f32 %v61, -1.7320508
    %v64 = vadd.f32 %v62, -1.7320508
    %v65 = vld [vmem:[%s1] sm:$0x1]
    %67 = vset.pattern.permute.xlu0 0
    %68 = vperm.xlu0 %67, %v63
    %v69 = vpop.permute.xlu0 %68
    %72 = vset.pattern.permute.xlu0 0
    %73 = vperm.xlu0 %72, %v64
    %v74 = vpop.permute.xlu0 %73
    %v77 = vperm.slane %v65, 0
    %v79 = vmul.f32 %v69, %v77
    %v80 = vmul.f32 %v74, %v77
    %v81 = vld [vmem:[%s2] sm:$0x1]
    %v83 = vperm.slane %v81, 0
    %v85 = vadd.f32 %v79, %v83
    %v86 = vadd.f32 %v80, %v83
    %v87 = vxor.u32 %v85, 2147483648
    %v88 = vxor.u32 %v86, 2147483648
    %v89 = vmul.f32 %v87, 1.442695
    %v90 = vpow.pop %v89
    %v91 = vmul.f32 %v88, 1.442695
    %v92 = vpow.pop %v91
    %v93 = vadd.f32 %v90, 1.0
    %v94 = vadd.f32 %v92, 1.0
    %v95 = vrcp.pop %v93
    %v96 = vmul.f32 %v93, %v95
    %v97 = vsub.f32 1.0, %v96
    %v98 = vmul.f32 %v95, %v97
    %v99 = vadd.f32 %v95, %v98
    %vm100 = vweird.f32 %v93
    %vm101 = vweird.f32 %v95
    %vm102 = vmor %vm100, %vm101
    %v103 = vsel %vm102, %v95, %v99
    %v104 = vand.u32 2147483647, %v93
    %vm105 = vcmp.eq.f32.partialorder %v104, 8.507059e+37
    %v106 = vand.u32 %v93, 2147483648
    %v107 = vor.u32 1.1754944e-38, %v106
    %v108 = vsel %vm105, %v107, %v103
    %v109 = vmul.f32 1.0, %v108
    %v110 = vrcp.pop %v94
    %v111 = vmul.f32 %v94, %v110
    %v112 = vsub.f32 1.0, %v111
    %v113 = vmul.f32 %v110, %v112
    %v114 = vadd.f32 %v110, %v113
    %vm115 = vweird.f32 %v94
    %vm116 = vweird.f32 %v110
    %vm117 = vmor %vm115, %vm116
    %v118 = vsel %vm117, %v110, %v114
    %v119 = vand.u32 2147483647, %v94
    %vm120 = vcmp.eq.f32.partialorder %v119, 8.507059e+37
    %v121 = vand.u32 %v94, 2147483648
    %v122 = vor.u32 1.1754944e-38, %v121
    %v123 = vsel %vm120, %v122, %v118
    %v124 = vmul.f32 1.0, %v123
    %v125 = vmul.f32 %v85, %v109
    %v126 = vmul.f32 %v86, %v124
    %v127 = vld [vmem:[#allocation2] sm:$0xff]
    %v128 = vld [vmem:[#allocation2 + $0x8] sm:$0xff]
    %v129 = vld [vmem:[#allocation2 + $0x10] sm:$0xff]
    %v130 = vld [vmem:[#allocation2 + $0x18] sm:$0xff]
    %v131 = vld [vmem:[%s4] sm:$0x1]
    %v133 = vperm.slane %v131, 0
    %vm135 = vcmask 261120
    %v137 = vsel %vm135, %v125, 0
    %v140 = vsel %vm135, %v126, 0
    %142 = vmatpush.msra.mxu0 0.0
    %143 = vmatpush.msra.mxu0 0.0
    %144 = vmatpush.msra.mxu0 0.0
    %145 = vmatpush.msra.mxu0 0.0
    %146 = vmatpush.msra.mxu0 0.0
    %147 = vmatpush.msra.mxu0 0.0
    %148 = vmatpush.msra.mxu0 0.0
    %149 = vmatpush.msra.mxu0 0.0
    %150 = vmatpush.msra.mxu0 0.0
    %151 = vmatpush.msra.mxu0 0.0
    %152 = vmatpush.msra.mxu0 0.0
    %153 = vmatpush.msra.mxu0 0.0
    %154 = vmatpush.msra.mxu0 %v130
    %155 = vmatpush.msra.mxu0 %v129
    %156 = vmatpush.msra.mxu0 %v128
    %157 = vmatpush.msra.mxu0 %v127
    %158 = vmatmul.f32.gmra.mxu0 %v137
    %v159 = vpop.f32.mrf.mxu0
    %v160 = vadd.f32 %v133, %v159
    %161 = vmatmul.f32.gmra.mxu0 %v140
    %v162 = vpop.f32.mrf.mxu0
    %v163 = vadd.f32 %v133, %v162
    %164 = vdwg.mxu0
    %v165 = vxor.u32 %v160, 2147483648
    %v166 = vxor.u32 %v163, 2147483648
    %v167 = vmul.f32 %v165, 1.442695
    %v168 = vpow.pop %v167
    %v169 = vmul.f32 %v166, 1.442695
    %v170 = vpow.pop %v169
    %v171 = vadd.f32 %v168, 1.0
    %v172 = vadd.f32 %v170, 1.0
    %v173 = vrcp.pop %v171
    %v174 = vmul.f32 %v171, %v173
    %v175 = vsub.f32 1.0, %v174
    %v176 = vmul.f32 %v173, %v175
    %v177 = vadd.f32 %v173, %v176
    %vm178 = vweird.f32 %v171
    %vm179 = vweird.f32 %v173
    %vm180 = vmor %vm178, %vm179
    %v181 = vsel %vm180, %v173, %v177
    %v182 = vand.u32 2147483647, %v171
    %vm183 = vcmp.eq.f32.partialorder %v182, 8.507059e+37
    %v184 = vand.u32 %v171, 2147483648
    %v185 = vor.u32 1.1754944e-38, %v184
    %v186 = vsel %vm183, %v185, %v181
    %v187 = vmul.f32 1.0, %v186
    %v188 = vrcp.pop %v172
    %v189 = vmul.f32 %v172, %v188
    %v190 = vsub.f32 1.0, %v189
    %v191 = vmul.f32 %v188, %v190
    %v192 = vadd.f32 %v188, %v191
    %vm193 = vweird.f32 %v172
    %vm194 = vweird.f32 %v188
    %vm195 = vmor %vm193, %vm194
    %v196 = vsel %vm195, %v188, %v192
    %v197 = vand.u32 2147483647, %v172
    %vm198 = vcmp.eq.f32.partialorder %v197, 8.507059e+37
    %v199 = vand.u32 %v172, 2147483648
    %v200 = vor.u32 1.1754944e-38, %v199
    %v201 = vsel %vm198, %v200, %v196
    %v202 = vmul.f32 1.0, %v201
    %v203 = vmul.f32 %v160, %v187
    %v204 = vmul.f32 %v163, %v202
    %v205 = vld [vmem:[#allocation5] sm:$0xff]
    %v206 = vld [vmem:[#allocation5 + $0x8] sm:$0xff]
    %v207 = vld [vmem:[#allocation5 + $0x10] sm:$0xff]
    %v208 = vld [vmem:[#allocation5 + $0x18] sm:$0xff]
    %v209 = vld [vmem:[%s6] sm:$0x1]
    %v211 = vperm.slane %v209, 0
    %v214 = vsel %vm135, %v203, 0
    %v217 = vsel %vm135, %v204, 0
    %219 = vmatpush.msra.mxu0 0.0
    %220 = vmatpush.msra.mxu0 0.0
    %221 = vmatpush.msra.mxu0 0.0
    %222 = vmatpush.msra.mxu0 0.0
    %223 = vmatpush.msra.mxu0 0.0
    %224 = vmatpush.msra.mxu0 0.0
    %225 = vmatpush.msra.mxu0 0.0
    %226 = vmatpush.msra.mxu0 0.0
    %227 = vmatpush.msra.mxu0 0.0
    %228 = vmatpush.msra.mxu0 0.0
    %229 = vmatpush.msra.mxu0 0.0
    %230 = vmatpush.msra.mxu0 0.0
    %231 = vmatpush.msra.mxu0 %v208
    %232 = vmatpush.msra.mxu0 %v207
    %233 = vmatpush.msra.mxu0 %v206
    %234 = vmatpush.msra.mxu0 %v205
    %235 = vmatmul.f32.gmra.mxu0 %v214
    %v236 = vpop.f32.mrf.mxu0
    %v237 = vadd.f32 %v211, %v236
    %238 = vmatmul.f32.gmra.mxu0 %v217
    %v239 = vpop.f32.mrf.mxu0
    %v240 = vadd.f32 %v211, %v239
    %241 = vdwg.mxu0
    %v242 = vmax.f32 %v237, 0.0
    %v243 = vmax.f32 %v240, 0.0
    %v244 = vand.u32 2147483647, %v237
    %v245 = vand.u32 2147483647, %v240
    %v246 = vsub.f32 0.0, %v244
    %v247 = vsub.f32 0.0, %v245
    %v248 = vmul.f32 %v246, 1.442695
    %v249 = vpow.pop %v248
    %v250 = vmul.f32 %v247, 1.442695
    %v251 = vpow.pop %v250
    %v252 = vadd.f32 %v249, 1.0
    %v253 = vlog2.pop %v252
    %v254 = vmul.f32 %v253, 0.6931472
    %v255 = vmul.f32 -0.5, %v249
    %v256 = vadd.f32 %v255, 1.0
    %v257 = vmul.f32 %v256, %v249
    %v258 = vand.u32 2147483647, %v249
    %vm259 = vcmp.lt.f32.partialorder %v258, 0.0004427343
    %v260 = vsel %vm259, %v257, %v254
    %v261 = vadd.f32 %v251, 1.0
    %v262 = vlog2.pop %v261
    %v263 = vmul.f32 %v262, 0.6931472
    %v264 = vmul.f32 -0.5, %v251
    %v265 = vadd.f32 %v264, 1.0
    %v266 = vmul.f32 %v265, %v251
    %v267 = vand.u32 2147483647, %v251
    %vm268 = vcmp.lt.f32.partialorder %v267, 0.0004427343
    %v269 = vsel %vm268, %v266, %v263
    %v270 = vadd.f32 %v242, %v260
    %v271 = vadd.f32 %v243, %v269
    %272 = vst [vmem:[#allocation7] sm:$0xff] %v270
    %273 = vst [vmem:[#allocation7 + $0x8] sm:$0xff] %v271
    // Predicated region
    $region38: #{tpu_custom_call.1} parent=1 // pred_check
      _
    $region39: #{tpu_custom_call.1} parent=1 // pred_check_branch
      %275 = sbr.rel (0) target = $region41
    $region40: #{tpu_custom_call.1} parent=1 // pred_region
      %277 = vsyncadd [#allocation4], 0
      %s278 = sshll.u32 [#allocation7], 4
      %s279 = int_to_ptr.vmem [resolvable:$true] %s278
      %s280 = sshll.u32 %s7, 4
      %s281 = int_to_ptr.hbm [resolvable:$true] %s280
      %286 = dma.vmem_to_hbm [thread:$0]  %s279, 256, %s281, [#allocation4], 128, 128, 8
    $region41: #{tpu_custom_call.1} parent=1 // pred_fallthru
      _
    // Predicated region
    $region42: #{tpu_custom_call.1} parent=1 // pred_check
      _
    $region43: #{tpu_custom_call.1} parent=1 // pred_check_branch
      %288 = sbr.rel (0) target = $region45
    $region44: #{tpu_custom_call.1} parent=1 // pred_region
      %290 = dma.done [#allocation4], 256
    $region45: #{tpu_custom_call.1} parent=1 // pred_fallthru
      _
    %291 = vsyncpa [#allocation3], 1
    %292 = vsyncpa [#allocation6], 1
    %293 = vsyncpa [#allocation4], 1

</llo_original>
